<compile_context>
chip_gen: v7x
topology: tpu7x:2x2x1
jax: 0.10.0
libtpu: 0.0.40
codegen_flags: <defaults>
</compile_context>

<pallas_src>
import jax
import jax.numpy as jnp
from jax.experimental import pallas as pl
from jax.experimental.pallas import tpu as pltpu

NEG_SLOPE = 0.01  # nn.LeakyReLU default negative_slope


def _deconv_phase_kernel(xa_ref, xb_ref, b_ref, bias_ref, o_ref):
    """Fused 4-tap sub-pixel deconv: 4 accumulating K=Cin bf16 matmuls
    + bias + LeakyReLU (f32 epilogue).

    xa_ref:   (th, W+1, Cin)   f32 padded-NHWC input rows [t*th, t*th+th)
    xb_ref:   (1,  W+1, Cin)   f32 padded-NHWC look-ahead row t*th+th
    b_ref:    (4, Cin, 4*Cout) bf16 per-tap phase-packed weights
    bias_ref: (1, 4*Cout)      f32 phase-replicated bias
    o_ref:    (th*W, 4*Cout)   f32 output rows, 4 phases packed along lanes
    """
    xa = xa_ref[...]
    xb = xb_ref[...]
    th, wp1, cin = xa.shape
    w = wp1 - 1
    m = th * w

    # Rows i+1 of the tile window, built without an extra (th+1)-row temp.
    if th == 1:
        xlo = xb
    else:
        xlo = jnp.concatenate([xa[1:], xb], axis=0)          # (th, W+1, Cin)

    def tap(v):
        # (th, W, Cin) -> (th*W, Cin) bf16; Cin stays in lanes (natural layout
        # for the matmul LHS), so no 128-lane channel concat is needed.
        return v.reshape(m, cin).astype(jnp.bfloat16)

    cur    = tap(xa[:, 0:w, :])        # x[i,   j  ]
    right  = tap(xa[:, 1:wp1, :])      # x[i,   j+1]
    down   = tap(xlo[:, 0:w, :])       # x[i+1, j  ]
    dright = tap(xlo[:, 1:wp1, :])     # x[i+1, j+1]

    # 4 accumulating K=Cin matmuls (bf16 operands, f32 accumulation on MXU).
    acc = jnp.dot(cur, b_ref[0], preferred_element_type=jnp.float32)
    acc = acc + jnp.dot(right,  b_ref[1], preferred_element_type=jnp.float32)
    acc = acc + jnp.dot(down,   b_ref[2], preferred_element_type=jnp.float32)
    acc = acc + jnp.dot(dright, b_ref[3], preferred_element_type=jnp.float32)

    acc = acc + bias_ref[...]
    o_ref[...] = jnp.maximum(acc, NEG_SLOPE * acc).astype(o_ref.dtype)


def _pick_row_tile(N, H, W, target_rows=2048):
    """Largest row tile th (divisor of H, sublane-aligned th*W) with
    th*W <= target_rows; bounded fallback (never silently whole-image),
    and keep >=2 total grid steps so v7x's two TensorCores both get work."""
    aligned = [th for th in range(1, H + 1)
               if H % th == 0 and (th * W) % 8 == 0]
    if not aligned:
        # TODO(synk): masked tail tile for H*W that is not sublane-aligned.
        return H
    fitting = [th for th in aligned if th * W <= target_rows]
    cands = fitting if fitting else aligned[:1]   # smallest aligned divisor
    th = max(cands)
    while N * (H // th) < 2:
        smaller = [c for c in cands if c < th]
        if not smaller:
            break
        th = max(smaller)
    return th


def deconv_forward(x, weight, bias, *, stride=2, padding=1, output_padding=1):
    """ConvTranspose2d(3x3, stride=2, padding=1, output_padding=1) + LeakyReLU."""
    N, Cin, H, W = x.shape
    Cin_w, Cout, kH, kW = weight.shape
    assert Cin == Cin_w
    assert (stride, padding, output_padding, kH, kW) == (2, 1, 1, 3, 3), \
        "phase decomposition below is specialized to k=3, s=2, p=1, op=1"
    Ho, Wo = 2 * H, 2 * W

    # ---- XLA glue: layout only (NCHW -> NHWC, +1 trailing zero row/col) ----
    x_nhwc = jnp.transpose(x, (0, 2, 3, 1))                       # (N,H,W,Cin)
    x_pad = jnp.pad(x_nhwc, ((0, 0), (0, 1), (0, 1), (0, 0)))     # (N,H+1,W+1,Cin)

    # ---- per-tap phase-packed weights (bf16 MXU operands) -------------------
    #   y[2i+ph, 2j+pw] = sum_taps x_tap[i, j] @ B[tap]   (phases along lanes)
    #   phase column order: (ph, pw) = (0,0), (0,1), (1,0), (1,1)
    z = jnp.zeros((Cin, Cout), weight.dtype)
    wk = lambda kh, kw: weight[:, :, kh, kw]                      # (Cin, Cout)
    B = jnp.stack([
        # tap x[i, j]
        jnp.concatenate([wk(1, 1), wk(1, 2), wk(2, 1), wk(2, 2)], axis=1),
        # tap x[i, j+1]
        jnp.concatenate([z,        wk(1, 0), z,        wk(2, 0)], axis=1),
        # tap x[i+1, j]
        jnp.concatenate([z,        z,        wk(0, 1), wk(0, 2)], axis=1),
        # tap x[i+1, j+1]
        jnp.concatenate([z,        z,        z,        wk(0, 0)], axis=1),
    ], axis=0).astype(jnp.bfloat16)                               # (4, Cin, 4*Cout)
    bias4 = jnp.tile(bias, 4).reshape(1, 4 * Cout).astype(jnp.float32)

    th = _pick_row_tile(N, H, W)
    grid = (N, H // th)
    Np = 4 * Cout

    out = pl.pallas_call(
        _deconv_phase_kernel,
        out_shape=jax.ShapeDtypeStruct((N, H * W, Np), x.dtype),
        grid_spec=pltpu.PrefetchScalarGridSpec(
            num_scalar_prefetch=0,
            grid=grid,
            in_specs=[
                # th input rows of the padded image
                pl.BlockSpec((None, th, W + 1, Cin),
                             lambda n, t: (n, t, 0, 0)),
                # one-row look-ahead (same array, element-granular H index);
                # kept as a second tiny block-DMA per step — acceptable per review.
                pl.BlockSpec((None, 1, W + 1, Cin),
                             lambda n, t: (n, (t + 1) * th, 0, 0)),
                # weights + bias: constant index_map -> resident in VMEM
                pl.BlockSpec((4, Cin, Np), lambda n, t: (0, 0, 0)),
                pl.BlockSpec((1, Np), lambda n, t: (0, 0)),
            ],
            out_specs=pl.BlockSpec((None, th * W, Np),
                                   lambda n, t: (n, t, 0)),
        ),
        compiler_params=pltpu.CompilerParams(
            dimension_semantics=("parallel", "parallel"),
            # footprint is a few MiB even at 2048-row tiles; explicit limit keeps
            # v5e(16MiB scoped)/v7x(32MiB scoped, 64MiB physical) safe.
            vmem_limit_bytes=32 * 1024 * 1024,
        ),
    )(x_pad, x_pad, B, bias4)

    # Interleave the 4 phases into the spatial grid and return NCHW
    # (single XLA transpose; NCHW is required by the module contract).
    out = out.reshape(N, H, W, 2, 2, Cout)
    out = jnp.transpose(out, (0, 5, 1, 3, 2, 4))                  # (N,C,H,2,W,2)
    return out.reshape(N, Cout, Ho, Wo)


def _reference(x, weight, bias, stride=2, padding=1, output_padding=1):
    """Pure-JAX reference for ConvTranspose2d + LeakyReLU (NCHW, f32)."""
    Cin, Cout, kH, kW = weight.shape
    w_conv = jnp.transpose(weight[:, :, ::-1, ::-1], (1, 0, 2, 3))  # OIHW
    lo = kH - 1 - padding
    hi = kH - 1 - padding + output_padding
    y = jax.lax.conv_general_dilated(
        x, w_conv, window_strides=(1, 1),
        padding=[(lo, hi), (lo, hi)],
        lhs_dilation=(stride, stride),
        dimension_numbers=("NCHW", "OIHW", "NCHW"))
    y = y + bias[None, :, None, None]
    return jnp.where(y >= 0, y, NEG_SLOPE * y)


if __name__ == "__main__":
    # small shapes consistent with the module defaults (Cin = Cout = 32)
    N, Cin, H, W = 2, 32, 8, 8
    Cout, k = 32, 3

    key = jax.random.PRNGKey(0)
    kx, kw, kb = jax.random.split(key, 3)
    x = jax.random.normal(kx, (N, Cin, H, W), dtype=jnp.float32)
    # deterministic synthetic params (PyTorch-like uniform fan-in init)
    bound = 1.0 / (Cin * k * k) ** 0.5
    weight = jax.random.uniform(kw, (Cin, Cout, k, k), jnp.float32, -bound, bound)
    bias = jax.random.uniform(kb, (Cout,), jnp.float32, -bound, bound)

    y = jax.jit(deconv_forward)(x, weight, bias)
    y = jax.block_until_ready(y)

    y_ref = _reference(x, weight, bias)
    assert y.shape == (N, Cout, 2 * H, 2 * W), y.shape
    # tolerance deliberately relaxed vs the pure-f32 version: matmul operands
    # are bf16 on the MXU (accumulation and epilogue stay f32).
    assert jnp.allclose(y, y_ref, rtol=1e-2, atol=1e-2), "mismatch vs reference"

    print("KERNEL_OK")
</pallas_src>

<mosaic_0001>
module attributes {stable_mosaic.version = 11 : i64} {
  func.func @_deconv_phase_kernel(%arg0: i32, %arg1: i32, %arg2: memref<1x8x9x32xf32, #tpu.memory_space<vmem>>, %arg3: memref<1x1x9x32xf32, #tpu.memory_space<vmem>>, %arg4: memref<4x32x128xbf16, #tpu.memory_space<vmem>>, %arg5: memref<1x128xf32, #tpu.memory_space<vmem>>, %arg6: memref<1x64x128xf32, #tpu.memory_space<vmem>>) attributes {dimension_semantics = [#tpu.dimension_semantics<parallel>, #tpu.dimension_semantics<parallel>], iteration_bounds = array<i64: 2, 1>, scalar_prefetch = 0 : i64, scratch_operands = 0 : i64, tpu.core_type = #tpu.core_type<tc>, window_params = [{transform_indices = @transform_0, window_bounds = array<i64: 1, 8, 9, 32>}, {transform_indices = @transform_1, window_bounds = array<i64: 1, 1, 9, 32>}, {pipeline_mode = #tpu.pipeline_mode<synchronous>, transform_indices = @transform_2, window_bounds = array<i64: 4, 32, 128>}, {pipeline_mode = #tpu.pipeline_mode<synchronous>, transform_indices = @transform_3, window_bounds = array<i64: 1, 128>}, {transform_indices = @transform_4, window_bounds = array<i64: 1, 64, 128>}]} {
    %c0 = arith.constant 0 : index
    %c0_0 = arith.constant 0 : index
    %c0_1 = arith.constant 0 : index
    %c0_2 = arith.constant 0 : index
    %0 = vector.load %arg2[%c0, %c0_0, %c0_1, %c0_2] : memref<1x8x9x32xf32, #tpu.memory_space<vmem>>, vector<1x8x9x32xf32>
    %1 = vector.shape_cast %0 : vector<1x8x9x32xf32> to vector<8x9x32xf32>
    %c0_3 = arith.constant 0 : index
    %c0_4 = arith.constant 0 : index
    %c0_5 = arith.constant 0 : index
    %c0_6 = arith.constant 0 : index
    %2 = vector.load %arg3[%c0_3, %c0_4, %c0_5, %c0_6] : memref<1x1x9x32xf32, #tpu.memory_space<vmem>>, vector<1x1x9x32xf32>
    %3 = vector.shape_cast %2 : vector<1x1x9x32xf32> to vector<1x9x32xf32>
    %4 = vector.extract_strided_slice %1 {offsets = [1, 0, 0], sizes = [7, 9, 32], strides = [1, 1, 1]} : vector<8x9x32xf32> to vector<7x9x32xf32>
    %5 = tpu.concatenate %4, %3 in 0 : vector<7x9x32xf32>, vector<1x9x32xf32> -> vector<8x9x32xf32>
    %6 = vector.extract_strided_slice %1 {offsets = [0, 0, 0], sizes = [8, 8, 32], strides = [1, 1, 1]} : vector<8x9x32xf32> to vector<8x8x32xf32>
    %7 = vector.shape_cast %6 : vector<8x8x32xf32> to vector<64x32xf32>
    %8 = arith.truncf %7 : vector<64x32xf32> to vector<64x32xbf16>
    %9 = vector.extract_strided_slice %1 {offsets = [0, 1, 0], sizes = [8, 8, 32], strides = [1, 1, 1]} : vector<8x9x32xf32> to vector<8x8x32xf32>
    %10 = vector.shape_cast %9 : vector<8x8x32xf32> to vector<64x32xf32>
    %11 = arith.truncf %10 : vector<64x32xf32> to vector<64x32xbf16>
    %12 = vector.extract_strided_slice %5 {offsets = [0, 0, 0], sizes = [8, 8, 32], strides = [1, 1, 1]} : vector<8x9x32xf32> to vector<8x8x32xf32>
    %13 = vector.shape_cast %12 : vector<8x8x32xf32> to vector<64x32xf32>
    %14 = arith.truncf %13 : vector<64x32xf32> to vector<64x32xbf16>
    %15 = vector.extract_strided_slice %5 {offsets = [0, 1, 0], sizes = [8, 8, 32], strides = [1, 1, 1]} : vector<8x9x32xf32> to vector<8x8x32xf32>
    %16 = vector.shape_cast %15 : vector<8x8x32xf32> to vector<64x32xf32>
    %17 = arith.truncf %16 : vector<64x32xf32> to vector<64x32xbf16>
    %c0_7 = arith.constant 0 : index
    %c0_8 = arith.constant 0 : index
    %c0_9 = arith.constant 0 : index
    %18 = vector.load %arg4[%c0_7, %c0_8, %c0_9] : memref<4x32x128xbf16, #tpu.memory_space<vmem>>, vector<1x32x128xbf16>
    %19 = vector.shape_cast %18 : vector<1x32x128xbf16> to vector<32x128xbf16>
    %cst = arith.constant dense<0.000000e+00> : vector<64x128xf32>
    %20 = tpu.matmul %8, %19, %cst {dimension_numbers = #tpu.dot_dimension_numbers<[1], [0], [0], [1], [0, 0, 1, 1], [], []>} : vector<64x32xbf16>, vector<32x128xbf16>, vector<64x128xf32> -> vector<64x128xf32>
    %c1 = arith.constant 1 : index
    %c0_10 = arith.constant 0 : index
    %c0_11 = arith.constant 0 : index
    %21 = vector.load %arg4[%c1, %c0_10, %c0_11] : memref<4x32x128xbf16, #tpu.memory_space<vmem>>, vector<1x32x128xbf16>
    %22 = vector.shape_cast %21 : vector<1x32x128xbf16> to vector<32x128xbf16>
    %cst_12 = arith.constant dense<0.000000e+00> : vector<64x128xf32>
    %23 = tpu.matmul %11, %22, %cst_12 {dimension_numbers = #tpu.dot_dimension_numbers<[1], [0], [0], [1], [0, 0, 1, 1], [], []>} : vector<64x32xbf16>, vector<32x128xbf16>, vector<64x128xf32> -> vector<64x128xf32>
    %24 = arith.addf %20, %23 : vector<64x128xf32>
    %c2 = arith.constant 2 : index
    %c0_13 = arith.constant 0 : index
    %c0_14 = arith.constant 0 : index
    %25 = vector.load %arg4[%c2, %c0_13, %c0_14] : memref<4x32x128xbf16, #tpu.memory_space<vmem>>, vector<1x32x128xbf16>
    %26 = vector.shape_cast %25 : vector<1x32x128xbf16> to vector<32x128xbf16>
    %cst_15 = arith.constant dense<0.000000e+00> : vector<64x128xf32>
    %27 = tpu.matmul %14, %26, %cst_15 {dimension_numbers = #tpu.dot_dimension_numbers<[1], [0], [0], [1], [0, 0, 1, 1], [], []>} : vector<64x32xbf16>, vector<32x128xbf16>, vector<64x128xf32> -> vector<64x128xf32>
    %28 = arith.addf %24, %27 : vector<64x128xf32>
    %c3 = arith.constant 3 : index
    %c0_16 = arith.constant 0 : index
    %c0_17 = arith.constant 0 : index
    %29 = vector.load %arg4[%c3, %c0_16, %c0_17] : memref<4x32x128xbf16, #tpu.memory_space<vmem>>, vector<1x32x128xbf16>
    %30 = vector.shape_cast %29 : vector<1x32x128xbf16> to vector<32x128xbf16>
    %cst_18 = arith.constant dense<0.000000e+00> : vector<64x128xf32>
    %31 = tpu.matmul %17, %30, %cst_18 {dimension_numbers = #tpu.dot_dimension_numbers<[1], [0], [0], [1], [0, 0, 1, 1], [], []>} : vector<64x32xbf16>, vector<32x128xbf16>, vector<64x128xf32> -> vector<64x128xf32>
    %32 = arith.addf %28, %31 : vector<64x128xf32>
    %c0_19 = arith.constant 0 : index
    %c0_20 = arith.constant 0 : index
    %33 = vector.load %arg5[%c0_19, %c0_20] : memref<1x128xf32, #tpu.memory_space<vmem>>, vector<1x128xf32>
    %34 = vector.broadcast %33 : vector<1x128xf32> to vector<64x128xf32>
    %35 = arith.addf %32, %34 : vector<64x128xf32>
    %cst_21 = arith.constant 0.00999999977 : f32
    %36 = vector.broadcast %cst_21 : f32 to vector<64x128xf32>
    %37 = arith.mulf %36, %35 : vector<64x128xf32>
    %38 = arith.maximumf %35, %37 : vector<64x128xf32>
    %c0_22 = arith.constant 0 : index
    %c0_23 = arith.constant 0 : index
    %c0_24 = arith.constant 0 : index
    %39 = vector.load %arg6[%c0_22, %c0_23, %c0_24] : memref<1x64x128xf32, #tpu.memory_space<vmem>>, vector<1x64x128xf32>
    %40 = vector.shape_cast %39 : vector<1x64x128xf32> to vector<64x128xf32>
    %41 = vector.shape_cast %38 : vector<64x128xf32> to vector<1x64x128xf32>
    tpu.vector_store %arg6[%c0_22, %c0_23, %c0_24], %41 {strides = array<i32>} : memref<1x64x128xf32, #tpu.memory_space<vmem>>, vector<1x64x128xf32>,
    return
  }
  func.func @transform_0(%arg0: i32, %arg1: i32) -> (i32, i32, i32, i32) {
    %c0_i32 = arith.constant 0 : i32
    %c0_i32_0 = arith.constant 0 : i32
    %c0_i32_1 = arith.constant 0 : i32
    return %arg0, %arg1, %c0_i32, %c0_i32_0 : i32, i32, i32, i32
  }
  func.func @transform_1(%arg0: i32, %arg1: i32) -> (i32, i32, i32, i32) {
    %c1_i32 = arith.constant 1 : i32
    %0 = arith.addi %arg1, %c1_i32 : i32
    %c8_i32 = arith.constant 8 : i32
    %1 = arith.muli %0, %c8_i32 : i32
    %c0_i32 = arith.constant 0 : i32
    %c0_i32_0 = arith.constant 0 : i32
    %c0_i32_1 = arith.constant 0 : i32
    return %arg0, %1, %c0_i32, %c0_i32_0 : i32, i32, i32, i32
  }
  func.func @transform_2(%arg0: i32, %arg1: i32) -> (i32, i32, i32) {
    %c0_i32 = arith.constant 0 : i32
    %c0_i32_0 = arith.constant 0 : i32
    %c0_i32_1 = arith.constant 0 : i32
    %c0_i32_2 = arith.constant 0 : i32
    return %c0_i32, %c0_i32_0, %c0_i32_1 : i32, i32, i32
  }
  func.func @transform_3(%arg0: i32, %arg1: i32) -> (i32, i32) {
    %c0_i32 = arith.constant 0 : i32
    %c0_i32_0 = arith.constant 0 : i32
    %c0_i32_1 = arith.constant 0 : i32
    return %c0_i32, %c0_i32_0 : i32, i32
  }
  func.func @transform_4(%arg0: i32, %arg1: i32) -> (i32, i32, i32) {
    %c0_i32 = arith.constant 0 : i32
    %c0_i32_0 = arith.constant 0 : i32
    return %arg0, %arg1, %c0_i32 : i32, i32, i32
  }
}

</mosaic_0001>

<llo_original>
// kernel: tile.8
$region0: #{tile.8}
  #allocation0 [shape = 's32[1]{0}', space=sflag, size = 0x4, scoped, tag = 'scoped memory for tile.8']
  %s0 = inlined_call_operand.vmem [shape: f32[32], index: 0, kind: input, shape index: {}]
  %s1 = inlined_call_operand.vmem [shape: f32[4,32], index: 1, kind: output, shape index: {}]
  // Predicated region
  $region2: #{tile.8} parent=0 // pred_check
    _
  $region3: #{tile.8} parent=0 // pred_check_branch
    %3 = sbr.rel (0) target = $region5
  $region4: #{tile.8} parent=0 // pred_region
    _
  $region5: #{tile.8} parent=0 // pred_fallthru
    _
  %v4 = vld [vmem:[%s0] ss:$0 sm:$0xff]
  %5 = vst [vmem:[%s1] sm:$0xf] %v4

// kernel: tile.9
$region0: #{tile.9}
  %s0 = inlined_call_operand.vmem [shape: f32[4,32], index: 0, kind: input, shape index: {}]
  %s1 = inlined_call_operand.vmem [shape: f32[1,128], index: 1, kind: output, shape index: {}]
  $region1: #{tile.9} parent=0
    #allocation0 [shape = 'u8[4096]{0}', space=vmem, size = 0x1000, scoped, tag = 'scoped mem for output reshape']
    #allocation1 [shape = 'u8[4096]{0}', space=vmem, size = 0x1000, scoped, tag = 'scoped mem for input reshape']
    %s3 = sshllo.u32 0, 4
    %v4 = vld [vmem:[%s0] sm:%s3]
    %5 = vst [vmem:[#allocation1] sm:%s3] %v4
    %v6 = vld [vmem:[#allocation1] sm:$0x1]
    %vm7 = vcmask 261120
    %8 = vst.msk [vmem:[#allocation0] sm:$0x1] %vm7, %v6
    %s9 = scalar_lea.vmem [#allocation1], 3
    %v10 = vld [vmem:[%s9] sm:$0x1]
    %11 = vrot.lane.b32.xlu0 %v10, 96
    %v12 = vpop.permute.xlu0 %11
    %vm13 = vcmask 1048320
    %14 = vst.msk [vmem:[#allocation0] sm:$0x1] %vm13, %v12
    %s15 = scalar_lea.vmem [#allocation1], 2
    %v16 = vld [vmem:[%s15] sm:$0x1]
    %17 = vrot.lane.b32.xlu0 %v16, 64
    %v18 = vpop.permute.xlu0 %17
    %vm19 = vcmask 785920
    %20 = vst.msk [vmem:[#allocation0] sm:$0x1] %vm19, %v18
    %s21 = scalar_lea.vmem [#allocation1], 1
    %v22 = vld [vmem:[%s21] sm:$0x1]
    %23 = vrot.lane.b32.xlu0 %v22, 32
    %v24 = vpop.permute.xlu0 %23
    %vm25 = vcmask 523520
    %26 = vst.msk [vmem:[#allocation0] sm:$0x1] %vm25, %v24
    %s28 = sshllo.u32 0, 1
    %v30 = vld [vmem:[#allocation0] sm:%s28]
    %s31 = sshllo.u32 0, 1
    %32 = vst [vmem:[%s1] sm:%s31] %v30

// kernel: deconv_forward.1
$region0: #{deconv_forward.1}
  #allocation0 [shape = 'u32[]', space=smem, size = 0x4, offset = 0x4, fixed_abs, tag = 'smem constant byte address 0x4 - core index']
  #allocation1 [shape = 'u32[144,128]{1,0:T(1,128)}', space=vmem, size = 0x12000, scoped, tag = 'internal scratch']
  %s0 = inlined_call_operand.vmem [shape: f32[2,9,9,32], index: 0, kind: input, shape index: {}, may-alias: {0,1}]
  %s1 = inlined_call_operand.vmem [shape: f32[2,9,9,32], index: 1, kind: input, shape index: {}, may-alias: {0,1}]
  %s2 = inlined_call_operand.vmem [shape: bf16[4,32,128], index: 2, kind: input, shape index: {}]
  %s3 = inlined_call_operand.vmem [shape: f32[1,128], index: 3, kind: input, shape index: {}]
  %s4 = inlined_call_operand.vmem [shape: f32[2,64,128], index: 4, kind: output, shape index: {}]
  %s5 = sld [smem:[#allocation0]]
  $region49: #{deconv_forward.1} parent=0
    _
  %s7 = ssub.s32 1, %s5
  %s8 = scalar_select 0, %s7, %s5
  loop: start=0, step=1, limit=4
  $region2: #{deconv_forward.1} parent=0 // loop_pre_header
    _
  $region3: #{deconv_forward.1} parent=0 // loop_header
    %s10 = sphi 0, %s14
    %p11 = scmp.ge.s32.totalorder %s10, 4
    %s17 = sphi 0, %s29
    %s18 = sphi 0, %s25
    %s19 = sphi 0, %s17
    %s20 = sphi 0, %s18
    %s21 = sphi 0, %s19
    %s22 = sphi 0, %s20
    %s34 = sphi 0, %s36
    %s37 = sphi 0, %s34
    %s38 = sphi 0, %s37
    %s54 = sphi 0, %s38
    %s66 = sphi 0, %s68
    %s69 = sphi 0, %s66
    %s70 = sphi 0, %s69
    %s86 = sphi 0, %s70
    %s90 = sphi 0, %s90
    %s92 = sphi 0, %s90
    %s93 = sphi 0, %s92
    %s107 = sphi 0, %s93
    %s111 = sphi 0, %s111
    %s113 = sphi 0, %s111
    %s114 = sphi 0, %s113
    %s128 = sphi 0, %s114
    %s136 = sphi 0, %s138
    %s139 = sphi 0, %s136
    %s140 = sphi 0, %s139
    %s156 = sphi 0, %s140
  $region4: #{deconv_forward.1} parent=0 // loop_header_branch
    %13 = sbr.rel (%p11) target = $region8
  $region5: #{deconv_forward.1} parent=0 // loop_body
    %s15 = ssub.s32 %s10, 1
    %s16 = ssub.s32 %s10, 2
    %s23 = sadd.s32 1, %s18
    %p24 = scmp.ge.s32.totalorder %s23, 1
    %s25 = scalar_select %p24, 0, %s23
    %s26 = sadd.s32 1, %s17
    %s27 = scalar_select %p24, %s26, %s17
    %p28 = scmp.ge.s32.totalorder %s27, 2
    %s29 = scalar_select %p28, 0, %s27
    %s30 = ssub.s32 %s17, %s29
    %s31 = ssub.s32 %s18, %s25
    %s32 = sor.u32 %s30, %s31
    %p33 = scmp.eq.s32.totalorder %s32, 0
    %s35 = sadd.s32 %s34, 1
    %s36 = scalar_select %p33, %s34, %s35
    %p39 = pneg %p33
    %p40 = scmp.eq.s32.totalorder %s10, 1
    %p41 = por %p39, %p40
    %p42 = scmp.ne.s32.totalorder %s34, %s37
    %p43 = scmp.eq.s32.totalorder %s10, 0
    %p44 = por %p42, %p43
    %p45 = scmp.ne.s32.totalorder %s34, %s37
    %p46 = scmp.eq.s32.totalorder %s15, 1
    %p47 = por %p45, %p46
    %p48 = scmp.ne.s32.totalorder %s37, %s38
    %p49 = scmp.eq.s32.totalorder %s15, 0
    %p50 = por %p48, %p49
    %p51 = scmp.ne.s32.totalorder %s37, %s38
    %p52 = scmp.eq.s32.totalorder %s16, 1
    %p53 = por %p51, %p52
    %p55 = scmp.ne.s32.totalorder %s38, %s54
    %p56 = scmp.eq.s32.totalorder %s16, 0
    %p57 = por %p55, %p56
    %s58 = sadd.s32 %s18, 1
    %s59 = smul.u32 %s58, 8
    %s60 = sadd.s32 %s25, 1
    %s61 = smul.u32 %s60, 8
    %s62 = ssub.s32 %s17, %s29
    %s63 = ssub.s32 %s59, %s61
    %s64 = sor.u32 %s62, %s63
    %p65 = scmp.eq.s32.totalorder %s64, 0
    %s67 = sadd.s32 %s66, 1
    %s68 = scalar_select %p65, %s66, %s67
    %p71 = pneg %p65
    %p72 = scmp.eq.s32.totalorder %s10, 1
    %p73 = por %p71, %p72
    %p74 = scmp.ne.s32.totalorder %s66, %s69
    %p75 = scmp.eq.s32.totalorder %s10, 0
    %p76 = por %p74, %p75
    %p77 = scmp.ne.s32.totalorder %s66, %s69
    %p78 = scmp.eq.s32.totalorder %s15, 1
    %p79 = por %p77, %p78
    %p80 = scmp.ne.s32.totalorder %s69, %s70
    %p81 = scmp.eq.s32.totalorder %s15, 0
    %p82 = por %p80, %p81
    %p83 = scmp.ne.s32.totalorder %s69, %s70
    %p84 = scmp.eq.s32.totalorder %s16, 1
    %p85 = por %p83, %p84
    %p87 = scmp.ne.s32.totalorder %s70, %s86
    %p88 = scmp.eq.s32.totalorder %s16, 0
    %p89 = por %p87, %p88
    %s91 = sadd.s32 %s90, 1
    %p94 = scmp.eq.s32.totalorder %s10, 1
    %p95 = scmp.ne.s32.totalorder %s90, %s92
    %p96 = scmp.eq.s32.totalorder %s10, 0
    %p97 = por %p95, %p96
    %p98 = scmp.ne.s32.totalorder %s90, %s92
    %p99 = scmp.eq.s32.totalorder %s15, 1
    %p100 = por %p98, %p99
    %p101 = scmp.ne.s32.totalorder %s92, %s93
    %p102 = scmp.eq.s32.totalorder %s15, 0
    %p103 = por %p101, %p102
    %p104 = scmp.ne.s32.totalorder %s92, %s93
    %p105 = scmp.eq.s32.totalorder %s16, 1
    %p106 = por %p104, %p105
    %p108 = scmp.ne.s32.totalorder %s93, %s107
    %p109 = scmp.eq.s32.totalorder %s16, 0
    %p110 = por %p108, %p109
    %s112 = sadd.s32 %s111, 1
    %p115 = scmp.eq.s32.totalorder %s10, 1
    %p116 = scmp.ne.s32.totalorder %s111, %s113
    %p117 = scmp.eq.s32.totalorder %s10, 0
    %p118 = por %p116, %p117
    %p119 = scmp.ne.s32.totalorder %s111, %s113
    %p120 = scmp.eq.s32.totalorder %s15, 1
    %p121 = por %p119, %p120
    %p122 = scmp.ne.s32.totalorder %s113, %s114
    %p123 = scmp.eq.s32.totalorder %s15, 0
    %p124 = por %p122, %p123
    %p125 = scmp.ne.s32.totalorder %s113, %s114
    %p126 = scmp.eq.s32.totalorder %s16, 1
    %p127 = por %p125, %p126
    %p129 = scmp.ne.s32.totalorder %s114, %s128
    %p130 = scmp.eq.s32.totalorder %s16, 0
    %p131 = por %p129, %p130
    %s132 = ssub.s32 %s17, %s29
    %s133 = ssub.s32 %s18, %s25
    %s134 = sor.u32 %s132, %s133
    %p135 = scmp.eq.s32.totalorder %s134, 0
    %s137 = sadd.s32 %s136, 1
    %s138 = scalar_select %p135, %s136, %s137
    %p141 = pneg %p135
    %p142 = scmp.eq.s32.totalorder %s10, 1
    %p143 = por %p141, %p142
    %p144 = scmp.ne.s32.totalorder %s136, %s139
    %p145 = scmp.eq.s32.totalorder %s10, 0
    %p146 = por %p144, %p145
    %p147 = scmp.ne.s32.totalorder %s136, %s139
    %p148 = scmp.eq.s32.totalorder %s15, 1
    %p149 = por %p147, %p148
    %p150 = scmp.ne.s32.totalorder %s139, %s140
    %p151 = scmp.eq.s32.totalorder %s15, 0
    %p152 = por %p150, %p151
    %p153 = scmp.ne.s32.totalorder %s139, %s140
    %p154 = scmp.eq.s32.totalorder %s16, 1
    %p155 = por %p153, %p154
    %p157 = scmp.ne.s32.totalorder %s140, %s156
    %p158 = scmp.eq.s32.totalorder %s16, 0
    %p159 = por %p157, %p158
    %p160 = scmp.le.s32.totalorder 1, %s10
    %p161 = scmp.lt.s32.totalorder %s10, 3
    %p162 = pnand %p160, %p161
    %p163 = pneg %p162
    // Predicated region
    $region9: #{deconv_forward.1} parent=5 // pred_check
      _
    $region10: #{deconv_forward.1} parent=5 // pred_check_branch
      %165 = sbr.rel (%p162) target = $region12
    $region11: #{deconv_forward.1} parent=5 // pred_region
      %s166 = ssub.s32 %s10, 1
      // Predicated region
      $region13: #{deconv_forward.1} parent=11 // pred_check
        %p167 = pneg %p103
      $region14: #{deconv_forward.1} parent=11 // pred_check_branch
        %169 = sbr.rel (%p167) target = $region16
      $region15: #{deconv_forward.1} parent=11 // pred_region
        _
      $region16: #{deconv_forward.1} parent=11 // pred_fallthru
        _
      // Predicated region
      $region17: #{deconv_forward.1} parent=11 // pred_check
        %p170 = pneg %p124
      $region18: #{deconv_forward.1} parent=11 // pred_check_branch
        %172 = sbr.rel (%p170) target = $region20
      $region19: #{deconv_forward.1} parent=11 // pred_region
        _
      $region20: #{deconv_forward.1} parent=11 // pred_fallthru
        _
    $region12: #{deconv_forward.1} parent=5 // pred_fallthru
      _
    %p173 = scmp.lt.s32.totalorder %s10, 2
    // Predicated region
    $region21: #{deconv_forward.1} parent=5 // pred_check
      %p174 = pneg %p173
    $region22: #{deconv_forward.1} parent=5 // pred_check_branch
      %176 = sbr.rel (%p174) target = $region24
    $region23: #{deconv_forward.1} parent=5 // pred_region
      // Predicated region
      $region25: #{deconv_forward.1} parent=23 // pred_check
        %p177 = pneg %p44
      $region26: #{deconv_forward.1} parent=23 // pred_check_branch
        %179 = sbr.rel (%p177) target = $region28
      $region27: #{deconv_forward.1} parent=23 // pred_region
        %s180 = smul.u32 8, %s18
        %s181 = ssub.s32 9, %s180
        %p182 = scmp.lt.s32.totalorder %s181, 8
        %s183 = scalar_select %p182, %s181, 8
        %s184 = smul.u32 128, %s183
        %s185 = smul.u32 %s184, 2
        %p186 = scmp.lt.s32.totalorder %s17, 1
        %s187 = scalar_select %p186, %s17, 1
        %p188 = scmp.lt.s32.totalorder %s180, 8
        %s189 = scalar_select %p188, %s180, 8
        %s190 = smul.addr %s189, 2
        %s191 = smul.addr %s187, 18
        %s192 = sadd.s32 %s190, %s191
        %s193 = smul.addr %s192, 8
        %s194 = scalar_lea.vmem %s0, %s193
        %s195 = smul.u32 8, %s18
        %s196 = ssub.s32 9, %s195
        %p197 = scmp.lt.s32.totalorder %s196, 8
        %s198 = scalar_select %p197, %s196, 8
        %s199 = smul.u32 128, %s198
        %s200 = smul.u32 %s199, 2
      $region28: #{deconv_forward.1} parent=23 // pred_fallthru
        _
      // Predicated region
      $region29: #{deconv_forward.1} parent=23 // pred_check
        %p201 = pneg %p76
      $region30: #{deconv_forward.1} parent=23 // pred_check_branch
        %203 = sbr.rel (%p201) target = $region32
      $region31: #{deconv_forward.1} parent=23 // pred_region
        %s204 = sadd.s32 %s18, 1
        %s205 = smul.u32 %s204, 8
        %p206 = scmp.lt.s32.totalorder %s17, 1
        %s207 = scalar_select %p206, %s17, 1
        %p208 = scmp.lt.s32.totalorder %s205, 8
        %s209 = scalar_select %p208, %s205, 8
        %s210 = smul.addr %s209, 2
        %s211 = smul.addr %s207, 18
        %s212 = sadd.s32 %s210, %s211
        %s213 = smul.addr %s212, 8
        %s214 = scalar_lea.vmem %s1, %s213
        %s215 = sadd.s32 %s18, 1
        %s216 = smul.u32 %s215, 8
      $region32: #{deconv_forward.1} parent=23 // pred_fallthru
        _
    $region24: #{deconv_forward.1} parent=5 // pred_fallthru
      _
    %p217 = scmp.le.s32.totalorder 1, %s10
    %p218 = scmp.lt.s32.totalorder %s10, 3
    %p219 = pnand %p217, %p218
    %p220 = pneg %p219
    // Predicated region
    $region33: #{deconv_forward.1} parent=5 // pred_check
      _
    $region34: #{deconv_forward.1} parent=5 // pred_check_branch
      %222 = sbr.rel (%p219) target = $region36
    $region35: #{deconv_forward.1} parent=5 // pred_region
      %s223 = ssub.s32 %s10, 1
      %s224 = smul.u32 8, %s20
      %s225 = ssub.s32 9, %s224
      %p226 = scmp.lt.s32.totalorder %s225, 8
      %s227 = scalar_select %p226, %s225, 8
      %s228 = smul.u32 128, %s227
      %s229 = smul.u32 %s228, 2
      %p230 = scmp.lt.s32.totalorder %s19, 1
      %s231 = scalar_select %p230, %s19, 1
      %p232 = scmp.lt.s32.totalorder %s224, 8
      %s233 = scalar_select %p232, %s224, 8
      %s234 = smul.addr %s233, 2
      %s235 = smul.addr %s231, 18
      %s236 = sadd.s32 %s234, %s235
      %s237 = smul.addr %s236, 8
      %s238 = scalar_lea.vmem %s0, %s237
      %p239 = pneg %p50
      %p240 = pneg %p47
      %s241 = sadd.s32 %s20, 1
      %s242 = smul.u32 %s241, 8
      %p243 = scmp.lt.s32.totalorder %s19, 1
      %s244 = scalar_select %p243, %s19, 1
      %p245 = scmp.lt.s32.totalorder %s242, 8
      %s246 = scalar_select %p245, %s242, 8
      %s247 = smul.addr %s246, 2
      %s248 = smul.addr %s244, 18
      %s249 = sadd.s32 %s247, %s248
      %s250 = smul.addr %s249, 8
      %s251 = scalar_lea.vmem %s1, %s250
      %p252 = pneg %p82
      %p253 = pneg %p79
      %p254 = pneg %p103
      %p255 = pneg %p100
      %p256 = pneg %p124
      %p257 = pneg %p121
      %p258 = pneg %p152
      %p259 = pneg %p149
      %s260 = smul.u32 8, %s20
      %p261 = scmp.lt.s32.totalorder %s19, 1
      %s262 = scalar_select %p261, %s19, 1
      %p263 = scmp.lt.s32.totalorder %s260, 7
      %s264 = scalar_select %p263, %s260, 7
      %s265 = smul.addr %s262, 8
      %s266 = sadd.s32 %s264, %s265
      %s267 = smul.addr %s266, 8
      %s268 = scalar_lea.vmem %s4, %s267
      %s269 = smul.u32 8, %s20
      %s270 = ssub.s32 9, %s269
      %p271 = scmp.lt.s32.totalorder %s270, 8
      %s272 = scalar_select %p271, %s270, 8
      %s273 = smul.u32 128, %s272
      %s274 = smul.u32 %s273, 2
      %p275 = scmp.lt.s32.totalorder %s19, 1
      %s276 = scalar_select %p275, %s19, 1
      %p277 = scmp.lt.s32.totalorder %s269, 8
      %s278 = scalar_select %p277, %s269, 8
      %s279 = smul.addr %s278, 2
      %s280 = smul.addr %s276, 18
      %s281 = sadd.s32 %s279, %s280
      %s282 = smul.addr %s281, 8
      %s283 = scalar_lea.vmem %s0, %s282
      %s284 = smul.u32 8, %s20
      %s285 = ssub.s32 9, %s284
      %p286 = scmp.lt.s32.totalorder %s285, 8
      %s287 = scalar_select %p286, %s285, 8
      %s288 = smul.u32 128, %s287
      %s289 = smul.u32 %s288, 2
      %s290 = sadd.s32 %s20, 1
      %s291 = smul.u32 %s290, 8
      %p292 = scmp.lt.s32.totalorder %s19, 1
      %s293 = scalar_select %p292, %s19, 1
      %p294 = scmp.lt.s32.totalorder %s291, 8
      %s295 = scalar_select %p294, %s291, 8
      %s296 = smul.addr %s295, 2
      %s297 = smul.addr %s293, 18
      %s298 = sadd.s32 %s296, %s297
      %s299 = smul.addr %s298, 8
      %s300 = scalar_lea.vmem %s1, %s299
      %s301 = sadd.s32 %s20, 1
      %s302 = smul.u32 %s301, 8
      %s303 = smul.u32 8, %s20
      %p304 = scmp.lt.s32.totalorder %s19, 1
      %s305 = scalar_select %p304, %s19, 1
      %p306 = scmp.lt.s32.totalorder %s303, 7
      %s307 = scalar_select %p306, %s303, 7
      %s308 = smul.addr %s305, 8
      %s309 = sadd.s32 %s307, %s308
      %s310 = smul.addr %s309, 8
      %s311 = scalar_lea.vmem %s4, %s310
      %s312 = smul.u32 8, %s20
      %v314 = vld [vmem:[%s283] sm:$0xff]
      %v315 = vld [vmem:[%s283 + $0x8] sm:$0x1]
      %v316 = vld [vmem:[%s283 + $0x10] sm:$0xff]
      %v317 = vld [vmem:[%s283 + $0x18] sm:$0x1]
      %v318 = vld [vmem:[%s283 + $0x20] sm:$0xff]
      %v319 = vld [vmem:[%s283 + $0x28] sm:$0x1]
      %v320 = vld [vmem:[%s283 + $0x30] sm:$0xff]
      %v321 = vld [vmem:[%s283 + $0x38] sm:$0x1]
      %v322 = vld [vmem:[%s283 + $0x40] sm:$0xff]
      %v323 = vld [vmem:[%s283 + $0x48] sm:$0x1]
      %v324 = vld [vmem:[%s283 + $0x50] sm:$0xff]
      %v325 = vld [vmem:[%s283 + $0x58] sm:$0x1]
      %v326 = vld [vmem:[%s283 + $0x60] sm:$0xff]
      %v327 = vld [vmem:[%s283 + $0x68] sm:$0x1]
      %v328 = vld [vmem:[%s283 + $0x70] sm:$0xff]
      %v329 = vld [vmem:[%s283 + $0x78] sm:$0x1]
      %v330 = vld [vmem:[%s300] sm:$0xff]
      %v331 = vld [vmem:[%s300 + $0x8] sm:$0x1]
      %v332 = vpack.c.bf16 %v316, %v314
      %v333 = vpack.c.bf16 %v320, %v318
      %v334 = vpack.c.bf16 %v324, %v322
      %v335 = vpack.c.bf16 %v328, %v326
      %vm352 = vcmask 1046528
      %v353 = vrot.slane %v314, 1
      %v354 = vrot.slane %v315, 1
      %v355 = vsel %vm352, %v353, %v354
      %v356 = vrot.slane %v316, 1
      %v357 = vrot.slane %v317, 1
      %v358 = vsel %vm352, %v356, %v357
      %v359 = vrot.slane %v318, 1
      %v360 = vrot.slane %v319, 1
      %v361 = vsel %vm352, %v359, %v360
      %v362 = vrot.slane %v320, 1
      %v363 = vrot.slane %v321, 1
      %v364 = vsel %vm352, %v362, %v363
      %v365 = vrot.slane %v322, 1
      %v366 = vrot.slane %v323, 1
      %v367 = vsel %vm352, %v365, %v366
      %v368 = vrot.slane %v324, 1
      %v369 = vrot.slane %v325, 1
      %v370 = vsel %vm352, %v368, %v369
      %v371 = vrot.slane %v326, 1
      %v372 = vrot.slane %v327, 1
      %v373 = vsel %vm352, %v371, %v372
      %v374 = vrot.slane %v328, 1
      %v375 = vrot.slane %v329, 1
      %v376 = vsel %vm352, %v374, %v375
      %v385 = vpack.c.bf16 %v358, %v355
      %v386 = vpack.c.bf16 %v364, %v361
      %v387 = vpack.c.bf16 %v370, %v367
      %v388 = vpack.c.bf16 %v376, %v373
      %v389 = vpack.c.bf16 %v318, %v316
      %v390 = vpack.c.bf16 %v322, %v320
      %v391 = vpack.c.bf16 %v326, %v324
      %v392 = vpack.c.bf16 %v330, %v328
      %v395 = vrot.slane %v330, 1
      %v396 = vrot.slane %v331, 1
      %v397 = vsel %vm352, %v395, %v396
      %v399 = vpack.c.bf16 %v361, %v358
      %v400 = vpack.c.bf16 %v367, %v364
      %v401 = vpack.c.bf16 %v373, %v370
      %v402 = vpack.c.bf16 %v397, %v376
      %v403 = vld [vmem:[%s2] sm:$0xf]
      %v404 = vld [vmem:[%s2 + $0x4] sm:$0xf]
      %v405 = vld [vmem:[%s2 + $0x8] sm:$0xf]
      %v406 = vld [vmem:[%s2 + $0xc] sm:$0xf]
      %s407 = scalar_lea.vmem %s2, 16
      %v408 = vld [vmem:[%s407] sm:$0xf]
      %v409 = vld [vmem:[%s407 + $0x4] sm:$0xf]
      %v410 = vld [vmem:[%s407 + $0x8] sm:$0xf]
      %v411 = vld [vmem:[%s407 + $0xc] sm:$0xf]
      %v416 = vunpack.c.l.b16 %v408
      %v417 = vunpack.c.l.b16 %v409
      %v418 = vunpack.c.l.b16 %v410
      %v419 = vunpack.c.l.b16 %v411
      %v420 = vpack.c.b16 %v417, %v416
      %v421 = vpack.c.b16 %v419, %v418
      %vm424 = vcmask 261120
      %v426 = vsel %vm424, %v385, 0
      %v429 = vsel %vm424, %v386, 0
      %v432 = vsel %vm424, %v387, 0
      %v435 = vsel %vm424, %v388, 0
      %437 = vmatprep.subr.bf16.mxu0 0
      %438 = vmatpush1.bf16.msra.mxu0 %v420
      %439 = vmatprep.subr.bf16.mxu0 0
      %440 = vmatpush1.bf16.msra.mxu0 %v421
      %441 = vmatprep.subr.bf16.mxu0 0
      %442 = vmatpush1.bf16.msra.mxu0 0
      %443 = vmatprep.subr.bf16.mxu0 0
      %444 = vmatpush1.bf16.msra.mxu0 0
      %445 = vmatprep.subr.bf16.mxu0 0
      %446 = vmatpush1.bf16.msra.mxu0 0
      %447 = vmatprep.subr.bf16.mxu0 0
      %448 = vmatpush1.bf16.msra.mxu0 0
      %449 = vmatprep.subr.bf16.mxu0 0
      %450 = vmatpush1.bf16.msra.mxu0 0
      %451 = vmatprep.subr.bf16.mxu0 0
      %452 = vmatpush1.bf16.msra.mxu0 0
      %453 = vmatprep.subr.bf16.mxu0 0
      %454 = vmatpush1.bf16.msra.mxu0 0
      %455 = vmatprep.subr.bf16.mxu0 0
      %456 = vmatpush1.bf16.msra.mxu0 0
      %457 = vmatprep.subr.bf16.mxu0 0
      %458 = vmatpush1.bf16.msra.mxu0 0
      %459 = vmatprep.subr.bf16.mxu0 0
      %460 = vmatpush1.bf16.msra.mxu0 0
      %461 = vmatprep.subr.bf16.mxu0 0
      %462 = vmatpush1.bf16.msra.mxu0 0
      %463 = vmatprep.subr.bf16.mxu0 0
      %464 = vmatpush1.bf16.msra.mxu0 0
      %465 = vmatprep.subr.bf16.mxu0 0
      %466 = vmatpush1.bf16.msra.mxu0 0
      %467 = vmatprep.subr.bf16.mxu0 0
      %468 = vmatpush1.bf16.msra.mxu0 0
      %469 = vmatprep.mubr.bf16.mxu0 0
      %470 = vmatmul.mubr.bf16.gmra.mrb[0].mxu0 %v426
      %v471 = vpop.f32.mrb[0].mxu0
      %v472 = vadd.f32 0.0, %v471
      %v473 = vpop.f32.mrb[0].mxu0
      %v474 = vpop.f32.mrb[0].mxu0
      %v475 = vadd.f32 0.0, %v474
      %v476 = vpop.f32.mrb[0].mxu0
      %477 = vmatprep.mubr.bf16.mxu0 0
      %478 = vmatmul.mubr.bf16.gmra.mrb[0].mxu0 %v429
      %v479 = vpop.f32.mrb[0].mxu0
      %v480 = vadd.f32 0.0, %v479
      %v481 = vpop.f32.mrb[0].mxu0
      %v482 = vpop.f32.mrb[0].mxu0
      %v483 = vadd.f32 0.0, %v482
      %v484 = vpop.f32.mrb[0].mxu0
      %485 = vmatprep.mubr.bf16.mxu0 0
      %486 = vmatmul.mubr.bf16.gmra.mrb[0].mxu0 %v432
      %v487 = vpop.f32.mrb[0].mxu0
      %v488 = vadd.f32 0.0, %v487
      %v489 = vpop.f32.mrb[0].mxu0
      %v490 = vpop.f32.mrb[0].mxu0
      %v491 = vadd.f32 0.0, %v490
      %v492 = vpop.f32.mrb[0].mxu0
      %493 = vmatprep.mubr.bf16.mxu0 0
      %494 = vmatmul.mubr.bf16.gmra.mrb[0].mxu0 %v435
      %v495 = vpop.f32.mrb[0].mxu0
      %v496 = vadd.f32 0.0, %v495
      %v497 = vpop.f32.mrb[0].mxu0
      %v498 = vpop.f32.mrb[0].mxu0
      %v499 = vadd.f32 0.0, %v498
      %v500 = vpop.f32.mrb[0].mxu0
      %501 = vdwg.mxu0
      %v506 = vunpack.c.l.b16 %v403
      %v507 = vunpack.c.l.b16 %v404
      %v508 = vunpack.c.l.b16 %v405
      %v509 = vunpack.c.l.b16 %v406
      %v510 = vpack.c.b16 %v507, %v506
      %v511 = vpack.c.b16 %v509, %v508
      %v515 = vsel %vm424, %v332, 0
      %v518 = vsel %vm424, %v333, 0
      %v521 = vsel %vm424, %v334, 0
      %v524 = vsel %vm424, %v335, 0
      %526 = vmatprep.subr.bf16.mxu0 0
      %527 = vmatpush1.bf16.msra.mxu0 %v510
      %528 = vmatprep.subr.bf16.mxu0 0
      %529 = vmatpush1.bf16.msra.mxu0 %v511
      %530 = vmatprep.subr.bf16.mxu0 0
      %531 = vmatpush1.bf16.msra.mxu0 0
      %532 = vmatprep.subr.bf16.mxu0 0
      %533 = vmatpush1.bf16.msra.mxu0 0
      %534 = vmatprep.subr.bf16.mxu0 0
      %535 = vmatpush1.bf16.msra.mxu0 0
      %536 = vmatprep.subr.bf16.mxu0 0
      %537 = vmatpush1.bf16.msra.mxu0 0
      %538 = vmatprep.subr.bf16.mxu0 0
      %539 = vmatpush1.bf16.msra.mxu0 0
      %540 = vmatprep.subr.bf16.mxu0 0
      %541 = vmatpush1.bf16.msra.mxu0 0
      %542 = vmatprep.subr.bf16.mxu0 0
      %543 = vmatpush1.bf16.msra.mxu0 0
      %544 = vmatprep.subr.bf16.mxu0 0
      %545 = vmatpush1.bf16.msra.mxu0 0
      %546 = vmatprep.subr.bf16.mxu0 0
      %547 = vmatpush1.bf16.msra.mxu0 0
      %548 = vmatprep.subr.bf16.mxu0 0
      %549 = vmatpush1.bf16.msra.mxu0 0
      %550 = vmatprep.subr.bf16.mxu0 0
      %551 = vmatpush1.bf16.msra.mxu0 0
      %552 = vmatprep.subr.bf16.mxu0 0
      %553 = vmatpush1.bf16.msra.mxu0 0
      %554 = vmatprep.subr.bf16.mxu0 0
      %555 = vmatpush1.bf16.msra.mxu0 0
      %556 = vmatprep.subr.bf16.mxu0 0
      %557 = vmatpush1.bf16.msra.mxu0 0
      %558 = vmatprep.mubr.bf16.mxu0 0
      %559 = vmatmul.mubr.bf16.gmra.mrb[0].mxu0 %v515
      %v560 = vpop.f32.mrb[0].mxu0
      %v561 = vadd.f32 %v472, %v560
      %v562 = vpop.f32.mrb[0].mxu0
      %v563 = vpop.f32.mrb[0].mxu0
      %v564 = vadd.f32 %v475, %v563
      %v565 = vpop.f32.mrb[0].mxu0
      %566 = vmatprep.mubr.bf16.mxu0 0
      %567 = vmatmul.mubr.bf16.gmra.mrb[0].mxu0 %v518
      %v568 = vpop.f32.mrb[0].mxu0
      %v569 = vadd.f32 %v480, %v568
      %v570 = vpop.f32.mrb[0].mxu0
      %v571 = vpop.f32.mrb[0].mxu0
      %v572 = vadd.f32 %v483, %v571
      %v573 = vpop.f32.mrb[0].mxu0
      %574 = vmatprep.mubr.bf16.mxu0 0
      %575 = vmatmul.mubr.bf16.gmra.mrb[0].mxu0 %v521
      %v576 = vpop.f32.mrb[0].mxu0
      %v577 = vadd.f32 %v488, %v576
      %v578 = vpop.f32.mrb[0].mxu0
      %v579 = vpop.f32.mrb[0].mxu0
      %v580 = vadd.f32 %v491, %v579
      %v581 = vpop.f32.mrb[0].mxu0
      %582 = vmatprep.mubr.bf16.mxu0 0
      %583 = vmatmul.mubr.bf16.gmra.mrb[0].mxu0 %v524
      %v584 = vpop.f32.mrb[0].mxu0
      %v585 = vadd.f32 %v496, %v584
      %v586 = vpop.f32.mrb[0].mxu0
      %v587 = vpop.f32.mrb[0].mxu0
      %v588 = vadd.f32 %v499, %v587
      %v589 = vpop.f32.mrb[0].mxu0
      %590 = vdwg.mxu0
      %s591 = scalar_lea.vmem %s2, 32
      %v592 = vld [vmem:[%s591] sm:$0xf]
      %v593 = vld [vmem:[%s591 + $0x4] sm:$0xf]
      %v594 = vld [vmem:[%s591 + $0x8] sm:$0xf]
      %v595 = vld [vmem:[%s591 + $0xc] sm:$0xf]
      %v600 = vunpack.c.l.b16 %v592
      %v601 = vunpack.c.l.b16 %v593
      %v602 = vunpack.c.l.b16 %v594
      %v603 = vunpack.c.l.b16 %v595
      %v604 = vpack.c.b16 %v601, %v600
      %v605 = vpack.c.b16 %v603, %v602
      %v609 = vsel %vm424, %v389, 0
      %v612 = vsel %vm424, %v390, 0
      %v615 = vsel %vm424, %v391, 0
      %v618 = vsel %vm424, %v392, 0
      %620 = vmatprep.subr.bf16.mxu0 0
      %621 = vmatpush1.bf16.msra.mxu0 %v604
      %622 = vmatprep.subr.bf16.mxu0 0
      %623 = vmatpush1.bf16.msra.mxu0 %v605
      %624 = vmatprep.subr.bf16.mxu0 0
      %625 = vmatpush1.bf16.msra.mxu0 0
      %626 = vmatprep.subr.bf16.mxu0 0
      %627 = vmatpush1.bf16.msra.mxu0 0
      %628 = vmatprep.subr.bf16.mxu0 0
      %629 = vmatpush1.bf16.msra.mxu0 0
      %630 = vmatprep.subr.bf16.mxu0 0
      %631 = vmatpush1.bf16.msra.mxu0 0
      %632 = vmatprep.subr.bf16.mxu0 0
      %633 = vmatpush1.bf16.msra.mxu0 0
      %634 = vmatprep.subr.bf16.mxu0 0
      %635 = vmatpush1.bf16.msra.mxu0 0
      %636 = vmatprep.subr.bf16.mxu0 0
      %637 = vmatpush1.bf16.msra.mxu0 0
      %638 = vmatprep.subr.bf16.mxu0 0
      %639 = vmatpush1.bf16.msra.mxu0 0
      %640 = vmatprep.subr.bf16.mxu0 0
      %641 = vmatpush1.bf16.msra.mxu0 0
      %642 = vmatprep.subr.bf16.mxu0 0
      %643 = vmatpush1.bf16.msra.mxu0 0
      %644 = vmatprep.subr.bf16.mxu0 0
      %645 = vmatpush1.bf16.msra.mxu0 0
      %646 = vmatprep.subr.bf16.mxu0 0
      %647 = vmatpush1.bf16.msra.mxu0 0
      %648 = vmatprep.subr.bf16.mxu0 0
      %649 = vmatpush1.bf16.msra.mxu0 0
      %650 = vmatprep.subr.bf16.mxu0 0
      %651 = vmatpush1.bf16.msra.mxu0 0
      %652 = vmatprep.mubr.bf16.mxu0 0
      %653 = vmatmul.mubr.bf16.gmra.mrb[0].mxu0 %v609
      %v654 = vpop.f32.mrb[0].mxu0
      %v655 = vadd.f32 0.0, %v654
      %v656 = vpop.f32.mrb[0].mxu0
      %v657 = vpop.f32.mrb[0].mxu0
      %v658 = vadd.f32 0.0, %v657
      %v659 = vpop.f32.mrb[0].mxu0
      %660 = vmatprep.mubr.bf16.mxu0 0
      %661 = vmatmul.mubr.bf16.gmra.mrb[0].mxu0 %v612
      %v662 = vpop.f32.mrb[0].mxu0
      %v663 = vadd.f32 0.0, %v662
      %v664 = vpop.f32.mrb[0].mxu0
      %v665 = vpop.f32.mrb[0].mxu0
      %v666 = vadd.f32 0.0, %v665
      %v667 = vpop.f32.mrb[0].mxu0
      %668 = vmatprep.mubr.bf16.mxu0 0
      %669 = vmatmul.mubr.bf16.gmra.mrb[0].mxu0 %v615
      %v670 = vpop.f32.mrb[0].mxu0
      %v671 = vadd.f32 0.0, %v670
      %v672 = vpop.f32.mrb[0].mxu0
      %v673 = vpop.f32.mrb[0].mxu0
      %v674 = vadd.f32 0.0, %v673
      %v675 = vpop.f32.mrb[0].mxu0
      %676 = vmatprep.mubr.bf16.mxu0 0
      %677 = vmatmul.mubr.bf16.gmra.mrb[0].mxu0 %v618
      %v678 = vpop.f32.mrb[0].mxu0
      %v679 = vadd.f32 0.0, %v678
      %v680 = vpop.f32.mrb[0].mxu0
      %v681 = vpop.f32.mrb[0].mxu0
      %v682 = vadd.f32 0.0, %v681
      %v683 = vpop.f32.mrb[0].mxu0
      %684 = vdwg.mxu0
      %v685 = vadd.f32 %v561, %v655
      %v686 = vadd.f32 %v564, %v658
      %v687 = vadd.f32 %v569, %v663
      %v688 = vadd.f32 %v572, %v666
      %v689 = vadd.f32 %v577, %v671
      %v690 = vadd.f32 %v580, %v674
      %v691 = vadd.f32 %v585, %v679
      %v692 = vadd.f32 %v588, %v682
      %s693 = scalar_lea.vmem %s2, 48
      %v694 = vld [vmem:[%s693] sm:$0xf]
      %v695 = vld [vmem:[%s693 + $0x4] sm:$0xf]
      %v696 = vld [vmem:[%s693 + $0x8] sm:$0xf]
      %v697 = vld [vmem:[%s693 + $0xc] sm:$0xf]
      %v702 = vunpack.c.l.b16 %v694
      %v703 = vunpack.c.l.b16 %v695
      %v704 = vunpack.c.l.b16 %v696
      %v705 = vunpack.c.l.b16 %v697
      %v706 = vpack.c.b16 %v703, %v702
      %v707 = vpack.c.b16 %v705, %v704
      %v711 = vsel %vm424, %v399, 0
      %v714 = vsel %vm424, %v400, 0
      %v717 = vsel %vm424, %v401, 0
      %v720 = vsel %vm424, %v402, 0
      %722 = vmatprep.subr.bf16.mxu0 0
      %723 = vmatpush1.bf16.msra.mxu0 %v706
      %724 = vmatprep.subr.bf16.mxu0 0
      %725 = vmatpush1.bf16.msra.mxu0 %v707
      %726 = vmatprep.subr.bf16.mxu0 0
      %727 = vmatpush1.bf16.msra.mxu0 0
      %728 = vmatprep.subr.bf16.mxu0 0
      %729 = vmatpush1.bf16.msra.mxu0 0
      %730 = vmatprep.subr.bf16.mxu0 0
      %731 = vmatpush1.bf16.msra.mxu0 0
      %732 = vmatprep.subr.bf16.mxu0 0
      %733 = vmatpush1.bf16.msra.mxu0 0
      %734 = vmatprep.subr.bf16.mxu0 0
      %735 = vmatpush1.bf16.msra.mxu0 0
      %736 = vmatprep.subr.bf16.mxu0 0
      %737 = vmatpush1.bf16.msra.mxu0 0
      %738 = vmatprep.subr.bf16.mxu0 0
      %739 = vmatpush1.bf16.msra.mxu0 0
      %740 = vmatprep.subr.bf16.mxu0 0
      %741 = vmatpush1.bf16.msra.mxu0 0
      %742 = vmatprep.subr.bf16.mxu0 0
      %743 = vmatpush1.bf16.msra.mxu0 0
      %744 = vmatprep.subr.bf16.mxu0 0
      %745 = vmatpush1.bf16.msra.mxu0 0
      %746 = vmatprep.subr.bf16.mxu0 0
      %747 = vmatpush1.bf16.msra.mxu0 0
      %748 = vmatprep.subr.bf16.mxu0 0
      %749 = vmatpush1.bf16.msra.mxu0 0
      %750 = vmatprep.subr.bf16.mxu0 0
      %751 = vmatpush1.bf16.msra.mxu0 0
      %752 = vmatprep.subr.bf16.mxu0 0
      %753 = vmatpush1.bf16.msra.mxu0 0
      %754 = vmatprep.mubr.bf16.mxu0 0
      %755 = vmatmul.mubr.bf16.gmra.mrb[0].mxu0 %v711
      %v756 = vpop.f32.mrb[0].mxu0
      %v757 = vadd.f32 0.0, %v756
      %v758 = vpop.f32.mrb[0].mxu0
      %v759 = vpop.f32.mrb[0].mxu0
      %v760 = vadd.f32 0.0, %v759
      %v761 = vpop.f32.mrb[0].mxu0
      %762 = vmatprep.mubr.bf16.mxu0 0
      %763 = vmatmul.mubr.bf16.gmra.mrb[0].mxu0 %v714
      %v764 = vpop.f32.mrb[0].mxu0
      %v765 = vadd.f32 0.0, %v764
      %v766 = vpop.f32.mrb[0].mxu0
      %v767 = vpop.f32.mrb[0].mxu0
      %v768 = vadd.f32 0.0, %v767
      %v769 = vpop.f32.mrb[0].mxu0
      %770 = vmatprep.mubr.bf16.mxu0 0
      %771 = vmatmul.mubr.bf16.gmra.mrb[0].mxu0 %v717
      %v772 = vpop.f32.mrb[0].mxu0
      %v773 = vadd.f32 0.0, %v772
      %v774 = vpop.f32.mrb[0].mxu0
      %v775 = vpop.f32.mrb[0].mxu0
      %v776 = vadd.f32 0.0, %v775
      %v777 = vpop.f32.mrb[0].mxu0
      %778 = vmatprep.mubr.bf16.mxu0 0
      %779 = vmatmul.mubr.bf16.gmra.mrb[0].mxu0 %v720
      %v780 = vpop.f32.mrb[0].mxu0
      %v781 = vadd.f32 0.0, %v780
      %v782 = vpop.f32.mrb[0].mxu0
      %v783 = vpop.f32.mrb[0].mxu0
      %v784 = vadd.f32 0.0, %v783
      %v785 = vpop.f32.mrb[0].mxu0
      %786 = vdwg.mxu0
      %v787 = vadd.f32 %v685, %v757
      %v788 = vadd.f32 %v686, %v760
      %v789 = vadd.f32 %v687, %v765
      %v790 = vadd.f32 %v688, %v768
      %v791 = vadd.f32 %v689, %v773
      %v792 = vadd.f32 %v690, %v776
      %v793 = vadd.f32 %v691, %v781
      %v794 = vadd.f32 %v692, %v784
      %v795 = vld [vmem:[%s3] sm:$0x1]
      %v797 = vlaneseq
      %v798 = vshrl.u32 %v797, 7
      %v799 = vsub.s32 0, %v798
      %v800 = vrot.slane %v795, %v799
      %v802 = vadd.f32 %v787, %v800
      %v803 = vadd.f32 %v788, %v800
      %v804 = vadd.f32 %v789, %v800
      %v805 = vadd.f32 %v790, %v800
      %v806 = vadd.f32 %v791, %v800
      %v807 = vadd.f32 %v792, %v800
      %v808 = vadd.f32 %v793, %v800
      %v809 = vadd.f32 %v794, %v800
      %v810 = vmul.f32 %v802, 0.01
      %v811 = vmul.f32 %v803, 0.01
      %v812 = vmul.f32 %v804, 0.01
      %v813 = vmul.f32 %v805, 0.01
      %v814 = vmul.f32 %v806, 0.01
      %v815 = vmul.f32 %v807, 0.01
      %v816 = vmul.f32 %v808, 0.01
      %v817 = vmul.f32 %v809, 0.01
      %v818 = vmax.f32 %v802, %v810
      %v819 = vmax.f32 %v803, %v811
      %v820 = vmax.f32 %v804, %v812
      %v821 = vmax.f32 %v805, %v813
      %v822 = vmax.f32 %v806, %v814
      %v823 = vmax.f32 %v807, %v815
      %v824 = vmax.f32 %v808, %v816
      %v825 = vmax.f32 %v809, %v817
      %826 = vst [vmem:[%s311] sm:$0xff] %v818
      %827 = vst [vmem:[%s311 + $0x8] sm:$0xff] %v819
      %828 = vst [vmem:[%s311 + $0x10] sm:$0xff] %v820
      %829 = vst [vmem:[%s311 + $0x18] sm:$0xff] %v821
      %830 = vst [vmem:[%s311 + $0x20] sm:$0xff] %v822
      %831 = vst [vmem:[%s311 + $0x28] sm:$0xff] %v823
      %832 = vst [vmem:[%s311 + $0x30] sm:$0xff] %v824
      %833 = vst [vmem:[%s311 + $0x38] sm:$0xff] %v825
      %s834 = smul.u32 8, %s20
      %p835 = scmp.lt.s32.totalorder %s19, 1
      %s836 = scalar_select %p835, %s19, 1
      %p837 = scmp.lt.s32.totalorder %s834, 7
      %s838 = scalar_select %p837, %s834, 7
      %s839 = smul.addr %s836, 8
      %s840 = sadd.s32 %s838, %s839
      %s841 = smul.addr %s840, 8
      %s842 = scalar_lea.vmem %s4, %s841
      // Predicated region
      $region37: #{deconv_forward.1} parent=35 // pred_check
        %p843 = pneg %p149
      $region38: #{deconv_forward.1} parent=35 // pred_check_branch
        %845 = sbr.rel (%p843) target = $region40
      $region39: #{deconv_forward.1} parent=35 // pred_region
        %s846 = smul.u32 8, %s20
      $region40: #{deconv_forward.1} parent=35 // pred_fallthru
        _
    $region36: #{deconv_forward.1} parent=5 // pred_fallthru
      _
    %p847 = scmp.le.s32.totalorder 2, %s10
    // Predicated region
    $region41: #{deconv_forward.1} parent=5 // pred_check
      %p848 = pneg %p847
    $region42: #{deconv_forward.1} parent=5 // pred_check_branch
      %850 = sbr.rel (%p848) target = $region44
    $region43: #{deconv_forward.1} parent=5 // pred_region
      %s851 = ssub.s32 %s10, 2
      // Predicated region
      $region45: #{deconv_forward.1} parent=43 // pred_check
        %p852 = pneg %p155
      $region46: #{deconv_forward.1} parent=43 // pred_check_branch
        %854 = sbr.rel (%p852) target = $region48
      $region47: #{deconv_forward.1} parent=43 // pred_region
        %s855 = smul.u32 8, %s22
        %p856 = scmp.lt.s32.totalorder %s21, 1
        %s857 = scalar_select %p856, %s21, 1
        %p858 = scmp.lt.s32.totalorder %s855, 7
        %s859 = scalar_select %p858, %s855, 7
        %s860 = smul.addr %s857, 8
        %s861 = sadd.s32 %s859, %s860
        %s862 = smul.addr %s861, 8
        %s863 = scalar_lea.vmem %s4, %s862
      $region48: #{deconv_forward.1} parent=43 // pred_fallthru
        _
    $region44: #{deconv_forward.1} parent=5 // pred_fallthru
      _
  $region6: #{deconv_forward.1} parent=0 // loop_footer
    %s14 = sadd.s32 1, %s10
  $region7: #{deconv_forward.1} parent=0 // loop_footer_branch
    %9 = sbr.rel target = $region3
  $region8: #{deconv_forward.1} parent=0 // loop_exit
    _

</llo_original>
